<compile_context>
chip_gen: v6e
topology: v6e:2x2x1
jax: 0.10.0
libtpu: 0.0.40
codegen_flags: <defaults>
</compile_context>

<pallas_src>
import jax
import jax.numpy as jnp
from jax.experimental import pallas as pl
from jax.experimental.pallas import tpu as pltpu

INPUT_SIZE = 46
HIDDEN_1 = 40
HIDDEN_2 = 30
NUM_CLASSES = 24


def _round_up(n, m):
    return ((n + m - 1) // m) * m


def _mlp_kernel(x_ref, w1_ref, b1_ref, w2_ref, b2_ref, w3_ref, b3_ref, o_ref):
    wdt = w1_ref.dtype  # storage/compute dtype of weights & activations fed to the MXU
    # fc1 + ReLU  (accumulate in f32, elementwise in f32)
    h1 = jnp.dot(x_ref[...], w1_ref[...], preferred_element_type=jnp.float32)
    h1 = jnp.maximum(h1 + b1_ref[...], 0.0)          # b1 is (1, H1), broadcasts over batch
    # fc2 + ReLU
    h2 = jnp.dot(h1.astype(wdt), w2_ref[...], preferred_element_type=jnp.float32)
    h2 = jnp.maximum(h2 + b2_ref[...], 0.0)
    # fc3 (logits, no activation)
    out = jnp.dot(h2.astype(wdt), w3_ref[...], preferred_element_type=jnp.float32)
    o_ref[...] = (out + b3_ref[...]).astype(o_ref.dtype)


def neural_net_forward(x, params, *, compute_dtype=jnp.float32, batch_tile=512):
    """Run the 3-layer MLP inside one batch-tiled Pallas kernel.

    x: (B, 46) float32
    params: dict with w1 (46,40), b1 (40,), w2 (40,30), b2 (30,), w3 (30,24), b3 (24,)
    compute_dtype: storage dtype for x and weights (f32 or bf16); accumulation is f32.
    returns: (B, 24) float32
    """
    B = x.shape[0]
    # Tile over the batch: multiple of 8 (sublane), capped at `batch_tile`.
    TB = min(batch_tile, _round_up(max(B, 1), 8))
    B_pad = _round_up(B, TB)

    xd = x.astype(compute_dtype)
    if B_pad != B:
        xd = jnp.pad(xd, ((0, B_pad - B), (0, 0)))

    w1 = params["w1"].astype(compute_dtype)
    w2 = params["w2"].astype(compute_dtype)
    w3 = params["w3"].astype(compute_dtype)
    # Biases as (1, H) f32 rows: broadcast cleanly, elementwise math stays f32.
    b1 = params["b1"].reshape(1, -1).astype(jnp.float32)
    b2 = params["b2"].reshape(1, -1).astype(jnp.float32)
    b3 = params["b3"].reshape(1, -1).astype(jnp.float32)

    grid = (pl.cdiv(B_pad, TB),)

    dtype_bytes = jnp.dtype(compute_dtype).itemsize
    weight_bytes = (INPUT_SIZE * HIDDEN_1 + HIDDEN_1 * HIDDEN_2 + HIDDEN_2 * NUM_CLASSES) * dtype_bytes
    bias_bytes = (HIDDEN_1 + HIDDEN_2 + NUM_CLASSES) * 4
    cost = pl.CostEstimate(
        flops=2 * B_pad * (INPUT_SIZE * HIDDEN_1 + HIDDEN_1 * HIDDEN_2 + HIDDEN_2 * NUM_CLASSES),
        transcendentals=0,
        bytes_accessed=B_pad * INPUT_SIZE * dtype_bytes
        + B_pad * NUM_CLASSES * 4
        + weight_bytes
        + bias_bytes,
    )

    out = pl.pallas_call(
        _mlp_kernel,
        out_shape=jax.ShapeDtypeStruct((B_pad, NUM_CLASSES), jnp.float32),
        grid=grid,
        in_specs=[
            # x: tiled along the batch axis (double-buffered by the pipeline).
            pl.BlockSpec((TB, INPUT_SIZE), lambda i: (i, 0)),
            # Weights / biases: constant block index -> fetched once, stay VMEM-resident.
            pl.BlockSpec((INPUT_SIZE, HIDDEN_1), lambda i: (0, 0)),
            pl.BlockSpec((1, HIDDEN_1), lambda i: (0, 0)),
            pl.BlockSpec((HIDDEN_1, HIDDEN_2), lambda i: (0, 0)),
            pl.BlockSpec((1, HIDDEN_2), lambda i: (0, 0)),
            pl.BlockSpec((HIDDEN_2, NUM_CLASSES), lambda i: (0, 0)),
            pl.BlockSpec((1, NUM_CLASSES), lambda i: (0, 0)),
        ],
        out_specs=pl.BlockSpec((TB, NUM_CLASSES), lambda i: (i, 0)),
        compiler_params=pltpu.CompilerParams(
            # Batch tiles are independent -> shard across both TCs on v7x.
            dimension_semantics=("parallel",),
            # Explicit scoped-VMEM budget, safe on all generations (v7x physical = 64 MiB).
            vmem_limit_bytes=32 * 1024 * 1024,
        ),
        cost_estimate=cost,
    )(xd, w1, b1, w2, b2, w3, b3)

    return out[:B]


def init_params(key):
    """Deterministic init matching PyTorch nn.Linear default: U(-1/sqrt(fan_in), +1/sqrt(fan_in))."""
    ks = jax.random.split(key, 6)

    def linear(kw, kb, fan_in, fan_out):
        bound = 1.0 / jnp.sqrt(fan_in)
        w = jax.random.uniform(kw, (fan_in, fan_out), jnp.float32, -bound, bound)
        b = jax.random.uniform(kb, (fan_out,), jnp.float32, -bound, bound)
        return w, b

    w1, b1 = linear(ks[0], ks[1], INPUT_SIZE, HIDDEN_1)
    w2, b2 = linear(ks[2], ks[3], HIDDEN_1, HIDDEN_2)
    w3, b3 = linear(ks[4], ks[5], HIDDEN_2, NUM_CLASSES)
    return {"w1": w1, "b1": b1, "w2": w2, "b2": b2, "w3": w3, "b3": b3}


def _reference_forward(x, p):
    h1 = jnp.maximum(x @ p["w1"] + p["b1"], 0.0)
    h2 = jnp.maximum(h1 @ p["w2"] + p["b2"], 0.0)
    return h2 @ p["w3"] + p["b3"]


if __name__ == "__main__":
    key = jax.random.PRNGKey(0)
    k_param, k_x1, k_x2 = jax.random.split(key, 3)

    params = init_params(k_param)

    # --- small batch, f32 path (exact semantics vs reference) ---
    B1 = 8
    x1 = jax.random.normal(k_x1, (B1, INPUT_SIZE), dtype=jnp.float32)
    out1 = jax.block_until_ready(neural_net_forward(x1, params))
    ref1 = _reference_forward(x1, params)
    assert out1.shape == (B1, NUM_CLASSES)
    assert jnp.allclose(out1, ref1, atol=1e-5, rtol=1e-5)

    # --- non-multiple batch, multi-tile grid (exercises padding + pipelining), f32 ---
    B2 = 300
    x2 = jax.random.normal(k_x2, (B2, INPUT_SIZE), dtype=jnp.float32)
    out2 = jax.block_until_ready(neural_net_forward(x2, params, batch_tile=128))
    ref2 = _reference_forward(x2, params)
    assert out2.shape == (B2, NUM_CLASSES)
    assert jnp.allclose(out2, ref2, atol=1e-5, rtol=1e-5)

    # --- bf16 storage path (halves HBM read traffic; f32 accumulation) ---
    out3 = jax.block_until_ready(
        neural_net_forward(x2, params, compute_dtype=jnp.bfloat16, batch_tile=128)
    )
    assert out3.shape == (B2, NUM_CLASSES)
    assert jnp.allclose(out3, ref2, atol=1e-1, rtol=1e-1)  # bf16 storage tolerance

    print("KERNEL_OK")
</pallas_src>

<mosaic_0001>
module attributes {stable_mosaic.version = 11 : i64} {
  func.func @_mlp_kernel(%arg0: i32, %arg1: memref<8x46xf32, #tpu.memory_space<vmem>>, %arg2: memref<46x40xf32, #tpu.memory_space<vmem>>, %arg3: memref<1x40xf32, #tpu.memory_space<vmem>>, %arg4: memref<40x30xf32, #tpu.memory_space<vmem>>, %arg5: memref<1x30xf32, #tpu.memory_space<vmem>>, %arg6: memref<30x24xf32, #tpu.memory_space<vmem>>, %arg7: memref<1x24xf32, #tpu.memory_space<vmem>>, %arg8: memref<8x24xf32, #tpu.memory_space<vmem>>) attributes {dimension_semantics = [#tpu.dimension_semantics<parallel>], iteration_bounds = array<i64: 1>, scalar_prefetch = 0 : i64, scratch_operands = 0 : i64, tpu.core_type = #tpu.core_type<tc>, window_params = [{transform_indices = @transform_0, window_bounds = array<i64: 8, 46>}, {pipeline_mode = #tpu.pipeline_mode<synchronous>, transform_indices = @transform_1, window_bounds = array<i64: 46, 40>}, {pipeline_mode = #tpu.pipeline_mode<synchronous>, transform_indices = @transform_2, window_bounds = array<i64: 1, 40>}, {pipeline_mode = #tpu.pipeline_mode<synchronous>, transform_indices = @transform_3, window_bounds = array<i64: 40, 30>}, {pipeline_mode = #tpu.pipeline_mode<synchronous>, transform_indices = @transform_4, window_bounds = array<i64: 1, 30>}, {pipeline_mode = #tpu.pipeline_mode<synchronous>, transform_indices = @transform_5, window_bounds = array<i64: 30, 24>}, {pipeline_mode = #tpu.pipeline_mode<synchronous>, transform_indices = @transform_6, window_bounds = array<i64: 1, 24>}, {transform_indices = @transform_7, window_bounds = array<i64: 8, 24>}]} {
    %c0 = arith.constant 0 : index
    %c0_0 = arith.constant 0 : index
    %0 = vector.load %arg1[%c0, %c0_0] : memref<8x46xf32, #tpu.memory_space<vmem>>, vector<8x46xf32>
    %c0_1 = arith.constant 0 : index
    %c0_2 = arith.constant 0 : index
    %1 = vector.load %arg2[%c0_1, %c0_2] : memref<46x40xf32, #tpu.memory_space<vmem>>, vector<46x40xf32>
    %cst = arith.constant dense<0.000000e+00> : vector<8x40xf32>
    %2 = tpu.matmul %0, %1, %cst {dimension_numbers = #tpu.dot_dimension_numbers<[1], [0], [0], [1], [0, 0, 1, 1], [], []>} : vector<8x46xf32>, vector<46x40xf32>, vector<8x40xf32> -> vector<8x40xf32>
    %c0_3 = arith.constant 0 : index
    %c0_4 = arith.constant 0 : index
    %3 = vector.load %arg3[%c0_3, %c0_4] : memref<1x40xf32, #tpu.memory_space<vmem>>, vector<1x40xf32>
    %4 = vector.broadcast %3 : vector<1x40xf32> to vector<8x40xf32>
    %5 = arith.addf %2, %4 : vector<8x40xf32>
    %cst_5 = arith.constant 0.000000e+00 : f32
    %6 = vector.broadcast %cst_5 : f32 to vector<8x40xf32>
    %7 = arith.maximumf %5, %6 : vector<8x40xf32>
    %c0_6 = arith.constant 0 : index
    %c0_7 = arith.constant 0 : index
    %8 = vector.load %arg4[%c0_6, %c0_7] : memref<40x30xf32, #tpu.memory_space<vmem>>, vector<40x30xf32>
    %cst_8 = arith.constant dense<0.000000e+00> : vector<8x30xf32>
    %9 = tpu.matmul %7, %8, %cst_8 {dimension_numbers = #tpu.dot_dimension_numbers<[1], [0], [0], [1], [0, 0, 1, 1], [], []>} : vector<8x40xf32>, vector<40x30xf32>, vector<8x30xf32> -> vector<8x30xf32>
    %c0_9 = arith.constant 0 : index
    %c0_10 = arith.constant 0 : index
    %10 = vector.load %arg5[%c0_9, %c0_10] : memref<1x30xf32, #tpu.memory_space<vmem>>, vector<1x30xf32>
    %11 = vector.broadcast %10 : vector<1x30xf32> to vector<8x30xf32>
    %12 = arith.addf %9, %11 : vector<8x30xf32>
    %cst_11 = arith.constant 0.000000e+00 : f32
    %13 = vector.broadcast %cst_11 : f32 to vector<8x30xf32>
    %14 = arith.maximumf %12, %13 : vector<8x30xf32>
    %c0_12 = arith.constant 0 : index
    %c0_13 = arith.constant 0 : index
    %15 = vector.load %arg6[%c0_12, %c0_13] : memref<30x24xf32, #tpu.memory_space<vmem>>, vector<30x24xf32>
    %cst_14 = arith.constant dense<0.000000e+00> : vector<8x24xf32>
    %16 = tpu.matmul %14, %15, %cst_14 {dimension_numbers = #tpu.dot_dimension_numbers<[1], [0], [0], [1], [0, 0, 1, 1], [], []>} : vector<8x30xf32>, vector<30x24xf32>, vector<8x24xf32> -> vector<8x24xf32>
    %c0_15 = arith.constant 0 : index
    %c0_16 = arith.constant 0 : index
    %17 = vector.load %arg7[%c0_15, %c0_16] : memref<1x24xf32, #tpu.memory_space<vmem>>, vector<1x24xf32>
    %18 = vector.broadcast %17 : vector<1x24xf32> to vector<8x24xf32>
    %19 = arith.addf %16, %18 : vector<8x24xf32>
    %c0_17 = arith.constant 0 : index
    %c0_18 = arith.constant 0 : index
    %20 = vector.load %arg8[%c0_17, %c0_18] : memref<8x24xf32, #tpu.memory_space<vmem>>, vector<8x24xf32>
    tpu.vector_store %arg8[%c0_17, %c0_18], %19 {strides = array<i32>} : memref<8x24xf32, #tpu.memory_space<vmem>>, vector<8x24xf32>,
    return
  }
  func.func @transform_0(%arg0: i32) -> (i32, i32) {
    %c0_i32 = arith.constant 0 : i32
    %c0_i32_0 = arith.constant 0 : i32
    return %arg0, %c0_i32 : i32, i32
  }
  func.func @transform_1(%arg0: i32) -> (i32, i32) {
    %c0_i32 = arith.constant 0 : i32
    %c0_i32_0 = arith.constant 0 : i32
    %c0_i32_1 = arith.constant 0 : i32
    return %c0_i32, %c0_i32_0 : i32, i32
  }
  func.func @transform_2(%arg0: i32) -> (i32, i32) {
    %c0_i32 = arith.constant 0 : i32
    %c0_i32_0 = arith.constant 0 : i32
    %c0_i32_1 = arith.constant 0 : i32
    return %c0_i32, %c0_i32_0 : i32, i32
  }
  func.func @transform_3(%arg0: i32) -> (i32, i32) {
    %c0_i32 = arith.constant 0 : i32
    %c0_i32_0 = arith.constant 0 : i32
    %c0_i32_1 = arith.constant 0 : i32
    return %c0_i32, %c0_i32_0 : i32, i32
  }
  func.func @transform_4(%arg0: i32) -> (i32, i32) {
    %c0_i32 = arith.constant 0 : i32
    %c0_i32_0 = arith.constant 0 : i32
    %c0_i32_1 = arith.constant 0 : i32
    return %c0_i32, %c0_i32_0 : i32, i32
  }
  func.func @transform_5(%arg0: i32) -> (i32, i32) {
    %c0_i32 = arith.constant 0 : i32
    %c0_i32_0 = arith.constant 0 : i32
    %c0_i32_1 = arith.constant 0 : i32
    return %c0_i32, %c0_i32_0 : i32, i32
  }
  func.func @transform_6(%arg0: i32) -> (i32, i32) {
    %c0_i32 = arith.constant 0 : i32
    %c0_i32_0 = arith.constant 0 : i32
    %c0_i32_1 = arith.constant 0 : i32
    return %c0_i32, %c0_i32_0 : i32, i32
  }
  func.func @transform_7(%arg0: i32) -> (i32, i32) {
    %c0_i32 = arith.constant 0 : i32
    %c0_i32_0 = arith.constant 0 : i32
    return %arg0, %c0_i32 : i32, i32
  }
}

</mosaic_0001>

<llo_original>
// kernel: tpu_custom_call.1
$region0: #{tpu_custom_call.1}
  #allocation0 [shape = 'u32[]', space=smem, size = 0x4, offset = 0x4, fixed_abs, tag = 'smem constant byte address 0x4 - core index']
  #allocation1 [shape = 'u32[144,128]{1,0:T(1,128)}', space=vmem, size = 0x12000, scoped, tag = 'internal scratch']
  %s0 = inlined_call_operand.vmem [shape: f32[8,46], index: 0, kind: input, shape index: {}]
  %s1 = inlined_call_operand.vmem [shape: f32[46,40], index: 1, kind: input, shape index: {}]
  %s2 = inlined_call_operand.vmem [shape: f32[1,40], index: 2, kind: input, shape index: {}]
  %s3 = inlined_call_operand.vmem [shape: f32[40,30], index: 3, kind: input, shape index: {}]
  %s4 = inlined_call_operand.vmem [shape: f32[1,30], index: 4, kind: input, shape index: {}]
  %s5 = inlined_call_operand.vmem [shape: f32[30,24], index: 5, kind: input, shape index: {}]
  %s6 = inlined_call_operand.vmem [shape: f32[1,24], index: 6, kind: input, shape index: {}]
  %s7 = inlined_call_operand.hbm [shape: f32[8,24], index: 7, kind: output, shape index: {}]
  %s8 = sld [smem:[#allocation0]]
  $region38: #{tpu_custom_call.1} parent=0
    _
  %s10 = ssub.s32 1, %s8
  %s11 = scalar_select 0, %s10, %s8
  $region1: #{tpu_custom_call.1} parent=0
    #allocation2 [shape = 'u8[4096]{0}', space=vmem, size = 0x1000, scoped, tag = 'output window, operand 0, single buffered']
    #allocation3 [shape = 's32[1]{0}', space=sflag, size = 0x4, scoped, tag = 'scoped memory for tpu_custom_call.1']
    %12 = vsyncpa [#allocation3], 0
    // Predicated region
    $region2: #{tpu_custom_call.1} parent=1 // pred_check
      _
    $region3: #{tpu_custom_call.1} parent=1 // pred_check_branch
      %14 = sbr.rel (0) target = $region5
    $region4: #{tpu_custom_call.1} parent=1 // pred_region
      _
    $region5: #{tpu_custom_call.1} parent=1 // pred_fallthru
      _
    // Predicated region
    $region6: #{tpu_custom_call.1} parent=1 // pred_check
      _
    $region7: #{tpu_custom_call.1} parent=1 // pred_check_branch
      %16 = sbr.rel (0) target = $region9
    $region8: #{tpu_custom_call.1} parent=1 // pred_region
      _
    $region9: #{tpu_custom_call.1} parent=1 // pred_fallthru
      _
    // Predicated region
    $region10: #{tpu_custom_call.1} parent=1 // pred_check
      _
    $region11: #{tpu_custom_call.1} parent=1 // pred_check_branch
      %18 = sbr.rel (0) target = $region13
    $region12: #{tpu_custom_call.1} parent=1 // pred_region
      _
    $region13: #{tpu_custom_call.1} parent=1 // pred_fallthru
      _
    // Predicated region
    $region14: #{tpu_custom_call.1} parent=1 // pred_check
      _
    $region15: #{tpu_custom_call.1} parent=1 // pred_check_branch
      %20 = sbr.rel (0) target = $region17
    $region16: #{tpu_custom_call.1} parent=1 // pred_region
      _
    $region17: #{tpu_custom_call.1} parent=1 // pred_fallthru
      _
    // Predicated region
    $region18: #{tpu_custom_call.1} parent=1 // pred_check
      _
    $region19: #{tpu_custom_call.1} parent=1 // pred_check_branch
      %22 = sbr.rel (0) target = $region21
    $region20: #{tpu_custom_call.1} parent=1 // pred_region
      _
    $region21: #{tpu_custom_call.1} parent=1 // pred_fallthru
      _
    // Predicated region
    $region22: #{tpu_custom_call.1} parent=1 // pred_check
      _
    $region23: #{tpu_custom_call.1} parent=1 // pred_check_branch
      %24 = sbr.rel (0) target = $region25
    $region24: #{tpu_custom_call.1} parent=1 // pred_region
      _
    $region25: #{tpu_custom_call.1} parent=1 // pred_fallthru
      _
    // Predicated region
    $region26: #{tpu_custom_call.1} parent=1 // pred_check
      _
    $region27: #{tpu_custom_call.1} parent=1 // pred_check_branch
      %26 = sbr.rel (0) target = $region29
    $region28: #{tpu_custom_call.1} parent=1 // pred_region
      _
    $region29: #{tpu_custom_call.1} parent=1 // pred_fallthru
      _
    %v27 = vld [vmem:[%s0] sm:$0xff]
    %v28 = vld [vmem:[%s1] sm:$0xff]
    %v29 = vld [vmem:[%s1 + $0x8] sm:$0xff]
    %v30 = vld [vmem:[%s1 + $0x10] sm:$0xff]
    %v31 = vld [vmem:[%s1 + $0x18] sm:$0xff]
    %v32 = vld [vmem:[%s1 + $0x20] sm:$0xff]
    %v33 = vld [vmem:[%s1 + $0x28] sm:$0x3f]
    %v34 = vld [vmem:[%s2] sm:$0x1]
    %v36 = vlaneseq
    %v37 = vshrl.u32 %v36, 7
    %v38 = vsub.s32 0, %v37
    %v39 = vrot.slane %v34, %v38
    %vm41 = vcmask 375808
    %v43 = vsel %vm41, %v27, 0
    %vm45 = vcmask 1045504
    %v47 = vsel %vm45, %v33, 0
    %49 = vmatprep.subr.mxu0 0.0
    %50 = vmatpush1.msra.mxu0 0.0
    %51 = vmatprep.subr.mxu0 0.0
    %52 = vmatpush1.msra.mxu0 0.0
    %53 = vmatprep.subr.mxu0 0.0
    %54 = vmatpush1.msra.mxu0 0.0
    %55 = vmatprep.subr.mxu0 0.0
    %56 = vmatpush1.msra.mxu0 0.0
    %57 = vmatprep.subr.mxu0 0.0
    %58 = vmatpush1.msra.mxu0 0.0
    %59 = vmatprep.subr.mxu0 0.0
    %60 = vmatpush1.msra.mxu0 0.0
    %61 = vmatprep.subr.mxu0 0.0
    %62 = vmatpush1.msra.mxu0 0.0
    %63 = vmatprep.subr.mxu0 0.0
    %64 = vmatpush1.msra.mxu0 0.0
    %65 = vmatprep.subr.mxu0 0.0
    %66 = vmatpush1.msra.mxu0 0.0
    %67 = vmatprep.subr.mxu0 0.0
    %68 = vmatpush1.msra.mxu0 0.0
    %69 = vmatprep.subr.mxu0 0.0
    %70 = vmatpush1.msra.mxu0 %v47
    %71 = vmatprep.subr.mxu0 0.0
    %72 = vmatpush1.msra.mxu0 %v32
    %73 = vmatprep.subr.mxu0 0.0
    %74 = vmatpush1.msra.mxu0 %v31
    %75 = vmatprep.subr.mxu0 0.0
    %76 = vmatpush1.msra.mxu0 %v30
    %77 = vmatprep.subr.mxu0 0.0
    %78 = vmatpush1.msra.mxu0 %v29
    %79 = vmatprep.subr.mxu0 0.0
    %80 = vmatpush1.msra.mxu0 %v28
    %81 = vmatprep.subr.mxu0 0.0
    %82 = vmatpush2.msra.mxu0 0.0
    %83 = vmatprep.subr.mxu0 0.0
    %84 = vmatpush2.msra.mxu0 0.0
    %85 = vmatprep.subr.mxu0 0.0
    %86 = vmatpush2.msra.mxu0 0.0
    %87 = vmatprep.subr.mxu0 0.0
    %88 = vmatpush2.msra.mxu0 0.0
    %89 = vmatprep.subr.mxu0 0.0
    %90 = vmatpush2.msra.mxu0 0.0
    %91 = vmatprep.subr.mxu0 0.0
    %92 = vmatpush2.msra.mxu0 0.0
    %93 = vmatprep.subr.mxu0 0.0
    %94 = vmatpush2.msra.mxu0 0.0
    %95 = vmatprep.subr.mxu0 0.0
    %96 = vmatpush2.msra.mxu0 0.0
    %97 = vmatprep.subr.mxu0 0.0
    %98 = vmatpush2.msra.mxu0 0.0
    %99 = vmatprep.subr.mxu0 0.0
    %100 = vmatpush2.msra.mxu0 0.0
    %101 = vmatprep.subr.mxu0 0.0
    %102 = vmatpush2.msra.mxu0 0.0
    %103 = vmatprep.subr.mxu0 0.0
    %104 = vmatpush2.msra.mxu0 0.0
    %105 = vmatprep.subr.mxu0 0.0
    %106 = vmatpush2.msra.mxu0 0.0
    %107 = vmatprep.subr.mxu0 0.0
    %108 = vmatpush2.msra.mxu0 0.0
    %109 = vmatprep.subr.mxu0 0.0
    %110 = vmatpush2.msra.mxu0 0.0
    %111 = vmatprep.subr.mxu0 0.0
    %112 = vmatpush2.msra.mxu0 0.0
    %113 = vmatprep.mubr.f32.mxu0 0.0
    %114 = vmatmul.mubr.f32.gmra.mxu0 %v43
    %v115 = vpop.f32.mrf.mxu0
    %v116 = vadd.f32 %v39, %v115
    %v117 = vpop.f32.mrf.mxu0
    %118 = vdwg.mxu0
    %v119 = vmax.f32 %v116, 0.0
    %v120 = vld [vmem:[%s3] sm:$0xff]
    %v121 = vld [vmem:[%s3 + $0x8] sm:$0xff]
    %v122 = vld [vmem:[%s3 + $0x10] sm:$0xff]
    %v123 = vld [vmem:[%s3 + $0x18] sm:$0xff]
    %v124 = vld [vmem:[%s3 + $0x20] sm:$0xff]
    %v125 = vld [vmem:[%s4] sm:$0x1]
    %v127 = vlaneseq
    %v128 = vshrl.u32 %v127, 7
    %v129 = vsub.s32 0, %v128
    %v130 = vrot.slane %v125, %v129
    %vm132 = vcmask 326656
    %v134 = vsel %vm132, %v119, 0
    %136 = vmatprep.subr.mxu0 0.0
    %137 = vmatpush1.msra.mxu0 0.0
    %138 = vmatprep.subr.mxu0 0.0
    %139 = vmatpush1.msra.mxu0 0.0
    %140 = vmatprep.subr.mxu0 0.0
    %141 = vmatpush1.msra.mxu0 0.0
    %142 = vmatprep.subr.mxu0 0.0
    %143 = vmatpush1.msra.mxu0 0.0
    %144 = vmatprep.subr.mxu0 0.0
    %145 = vmatpush1.msra.mxu0 0.0
    %146 = vmatprep.subr.mxu0 0.0
    %147 = vmatpush1.msra.mxu0 0.0
    %148 = vmatprep.subr.mxu0 0.0
    %149 = vmatpush1.msra.mxu0 0.0
    %150 = vmatprep.subr.mxu0 0.0
    %151 = vmatpush1.msra.mxu0 0.0
    %152 = vmatprep.subr.mxu0 0.0
    %153 = vmatpush1.msra.mxu0 0.0
    %154 = vmatprep.subr.mxu0 0.0
    %155 = vmatpush1.msra.mxu0 0.0
    %156 = vmatprep.subr.mxu0 0.0
    %157 = vmatpush1.msra.mxu0 0.0
    %158 = vmatprep.subr.mxu0 0.0
    %159 = vmatpush1.msra.mxu0 %v124
    %160 = vmatprep.subr.mxu0 0.0
    %161 = vmatpush1.msra.mxu0 %v123
    %162 = vmatprep.subr.mxu0 0.0
    %163 = vmatpush1.msra.mxu0 %v122
    %164 = vmatprep.subr.mxu0 0.0
    %165 = vmatpush1.msra.mxu0 %v121
    %166 = vmatprep.subr.mxu0 0.0
    %167 = vmatpush1.msra.mxu0 %v120
    %168 = vmatprep.subr.mxu0 0.0
    %169 = vmatpush2.msra.mxu0 0.0
    %170 = vmatprep.subr.mxu0 0.0
    %171 = vmatpush2.msra.mxu0 0.0
    %172 = vmatprep.subr.mxu0 0.0
    %173 = vmatpush2.msra.mxu0 0.0
    %174 = vmatprep.subr.mxu0 0.0
    %175 = vmatpush2.msra.mxu0 0.0
    %176 = vmatprep.subr.mxu0 0.0
    %177 = vmatpush2.msra.mxu0 0.0
    %178 = vmatprep.subr.mxu0 0.0
    %179 = vmatpush2.msra.mxu0 0.0
    %180 = vmatprep.subr.mxu0 0.0
    %181 = vmatpush2.msra.mxu0 0.0
    %182 = vmatprep.subr.mxu0 0.0
    %183 = vmatpush2.msra.mxu0 0.0
    %184 = vmatprep.subr.mxu0 0.0
    %185 = vmatpush2.msra.mxu0 0.0
    %186 = vmatprep.subr.mxu0 0.0
    %187 = vmatpush2.msra.mxu0 0.0
    %188 = vmatprep.subr.mxu0 0.0
    %189 = vmatpush2.msra.mxu0 0.0
    %190 = vmatprep.subr.mxu0 0.0
    %191 = vmatpush2.msra.mxu0 0.0
    %192 = vmatprep.subr.mxu0 0.0
    %193 = vmatpush2.msra.mxu0 0.0
    %194 = vmatprep.subr.mxu0 0.0
    %195 = vmatpush2.msra.mxu0 0.0
    %196 = vmatprep.subr.mxu0 0.0
    %197 = vmatpush2.msra.mxu0 0.0
    %198 = vmatprep.subr.mxu0 0.0
    %199 = vmatpush2.msra.mxu0 0.0
    %200 = vmatprep.mubr.f32.mxu0 0.0
    %201 = vmatmul.mubr.f32.gmra.mxu0 %v134
    %v202 = vpop.f32.mrf.mxu0
    %v203 = vadd.f32 %v130, %v202
    %v204 = vpop.f32.mrf.mxu0
    %205 = vdwg.mxu0
    %v206 = vmax.f32 %v203, 0.0
    %v207 = vld [vmem:[%s5] sm:$0xff]
    %v208 = vld [vmem:[%s5 + $0x8] sm:$0xff]
    %v209 = vld [vmem:[%s5 + $0x10] sm:$0xff]
    %v210 = vld [vmem:[%s5 + $0x18] sm:$0x3f]
    %v211 = vld [vmem:[%s6] sm:$0x1]
    %v213 = vlaneseq
    %v214 = vshrl.u32 %v213, 7
    %v215 = vsub.s32 0, %v214
    %v216 = vrot.slane %v211, %v215
    %vm218 = vcmask 244736
    %v220 = vsel %vm218, %v206, 0
    %v223 = vsel %vm45, %v210, 0
    %225 = vmatprep.subr.mxu0 0.0
    %226 = vmatpush1.msra.mxu0 0.0
    %227 = vmatprep.subr.mxu0 0.0
    %228 = vmatpush1.msra.mxu0 0.0
    %229 = vmatprep.subr.mxu0 0.0
    %230 = vmatpush1.msra.mxu0 0.0
    %231 = vmatprep.subr.mxu0 0.0
    %232 = vmatpush1.msra.mxu0 0.0
    %233 = vmatprep.subr.mxu0 0.0
    %234 = vmatpush1.msra.mxu0 0.0
    %235 = vmatprep.subr.mxu0 0.0
    %236 = vmatpush1.msra.mxu0 0.0
    %237 = vmatprep.subr.mxu0 0.0
    %238 = vmatpush1.msra.mxu0 0.0
    %239 = vmatprep.subr.mxu0 0.0
    %240 = vmatpush1.msra.mxu0 0.0
    %241 = vmatprep.subr.mxu0 0.0
    %242 = vmatpush1.msra.mxu0 0.0
    %243 = vmatprep.subr.mxu0 0.0
    %244 = vmatpush1.msra.mxu0 0.0
    %245 = vmatprep.subr.mxu0 0.0
    %246 = vmatpush1.msra.mxu0 0.0
    %247 = vmatprep.subr.mxu0 0.0
    %248 = vmatpush1.msra.mxu0 0.0
    %249 = vmatprep.subr.mxu0 0.0
    %250 = vmatpush1.msra.mxu0 %v223
    %251 = vmatprep.subr.mxu0 0.0
    %252 = vmatpush1.msra.mxu0 %v209
    %253 = vmatprep.subr.mxu0 0.0
    %254 = vmatpush1.msra.mxu0 %v208
    %255 = vmatprep.subr.mxu0 0.0
    %256 = vmatpush1.msra.mxu0 %v207
    %257 = vmatprep.subr.mxu0 0.0
    %258 = vmatpush2.msra.mxu0 0.0
    %259 = vmatprep.subr.mxu0 0.0
    %260 = vmatpush2.msra.mxu0 0.0
    %261 = vmatprep.subr.mxu0 0.0
    %262 = vmatpush2.msra.mxu0 0.0
    %263 = vmatprep.subr.mxu0 0.0
    %264 = vmatpush2.msra.mxu0 0.0
    %265 = vmatprep.subr.mxu0 0.0
    %266 = vmatpush2.msra.mxu0 0.0
    %267 = vmatprep.subr.mxu0 0.0
    %268 = vmatpush2.msra.mxu0 0.0
    %269 = vmatprep.subr.mxu0 0.0
    %270 = vmatpush2.msra.mxu0 0.0
    %271 = vmatprep.subr.mxu0 0.0
    %272 = vmatpush2.msra.mxu0 0.0
    %273 = vmatprep.subr.mxu0 0.0
    %274 = vmatpush2.msra.mxu0 0.0
    %275 = vmatprep.subr.mxu0 0.0
    %276 = vmatpush2.msra.mxu0 0.0
    %277 = vmatprep.subr.mxu0 0.0
    %278 = vmatpush2.msra.mxu0 0.0
    %279 = vmatprep.subr.mxu0 0.0
    %280 = vmatpush2.msra.mxu0 0.0
    %281 = vmatprep.subr.mxu0 0.0
    %282 = vmatpush2.msra.mxu0 0.0
    %283 = vmatprep.subr.mxu0 0.0
    %284 = vmatpush2.msra.mxu0 0.0
    %285 = vmatprep.subr.mxu0 0.0
    %286 = vmatpush2.msra.mxu0 0.0
    %287 = vmatprep.subr.mxu0 0.0
    %288 = vmatpush2.msra.mxu0 0.0
    %289 = vmatprep.mubr.f32.mxu0 0.0
    %290 = vmatmul.mubr.f32.gmra.mxu0 %v220
    %v291 = vpop.f32.mrf.mxu0
    %v292 = vadd.f32 %v216, %v291
    %v293 = vpop.f32.mrf.mxu0
    %294 = vdwg.mxu0
    %vm295 = vcmask 195584
    %296 = vst.msk [vmem:[#allocation2] sm:$0xff] %vm295, %v292
    // Predicated region
    $region30: #{tpu_custom_call.1} parent=1 // pred_check
      _
    $region31: #{tpu_custom_call.1} parent=1 // pred_check_branch
      %298 = sbr.rel (0) target = $region33
    $region32: #{tpu_custom_call.1} parent=1 // pred_region
      %s300 = ssub.s32 128, 128
      %301 = vsyncadd [#allocation3], %s300
      %s303 = sshll.u32 [#allocation2], 4
      %s304 = int_to_ptr.vmem [resolvable:$true] %s303
      %306 = dma.vmem_to_hbm [thread:$0]  %s304, 128, %s7, [#allocation3]
    $region33: #{tpu_custom_call.1} parent=1 // pred_fallthru
      _
    // Predicated region
    $region34: #{tpu_custom_call.1} parent=1 // pred_check
      _
    $region35: #{tpu_custom_call.1} parent=1 // pred_check_branch
      %308 = sbr.rel (0) target = $region37
    $region36: #{tpu_custom_call.1} parent=1 // pred_region
      %309 = dma.done [#allocation3], 128
    $region37: #{tpu_custom_call.1} parent=1 // pred_fallthru
      _
    %310 = vsyncpa [#allocation3], 1

</llo_original>
